<compile_context>
chip_gen: v6e
topology: v6e:2x2x1
jax: 0.10.0
libtpu: 0.0.40
codegen_flags: <defaults>
</compile_context>

<pallas_src>
import functools

import jax
import jax.numpy as jnp
from jax.experimental import pallas as pl
from jax.experimental.pallas import tpu as pltpu


LATENT_DIMS = 3
LAYER_DIMS = (LATENT_DIMS, 5, 6, 7, 8, 9, 10, 11)   # feature width chain (in -> out)
N_LAYERS = len(LAYER_DIMS) - 1                       # 7 linear layers
OUT_FEATURES = LAYER_DIMS[-1]                        # 11
PAD = 16                                             # padded feature dim (multiple of 8, >= max width)
DEFAULT_TB = 512                                     # batch tile on lanes (multiple of 128)


def _round_up(x, m):
    return ((x + m - 1) // m) * m


def _decoder_kernel(w_ref, b_ref, z_ref, o_ref):
    """(F, B) layout: features on sublanes (padded to PAD), batch on lanes (TB).

    w_ref: (N_LAYERS, PAD, PAD)  layer l holds W_l (out, in), zero-padded.
    b_ref: (N_LAYERS, PAD, 1)    layer l holds b_l, zero-padded.
    z_ref: (PAD, TB)             padded latent tile.
    o_ref: (PAD, TB)             rows [0, 11) hold the decoder output.
    """
    h = z_ref[...]                                           # (PAD, TB) f32
    for l in range(N_LAYERS):                                # unrolled: 7 tiny matmuls
        w = w_ref[l]                                         # (PAD, PAD), static slice
        b = b_ref[l]                                         # (PAD, 1)
        h = jnp.dot(w, h, preferred_element_type=jnp.float32) + b
        if l < N_LAYERS - 1:
            h = jnp.maximum(h, 0.0)                          # ReLU on all but last layer
    o_ref[...] = h.astype(o_ref.dtype)


@functools.partial(jax.jit, static_argnames=("tb",))
def vae_decoder_forward(z, w_packed, b_packed, *, tb=DEFAULT_TB):
    """z: (B, latent_dims) -> (B, 11) float32."""
    B = z.shape[0]
    z2 = z.reshape(B, -1).astype(jnp.float32)
    L = z2.shape[1]
    assert L == LATENT_DIMS, "latent width must match packed parameters"

    # batch-on-lanes layout; pad features to PAD sublanes and batch to a tile multiple.
    tb_eff = min(tb, _round_up(B, 128))
    B_pad = _round_up(B, tb_eff)
    xT = jnp.pad(z2.T, ((0, PAD - L), (0, B_pad - B)))       # (PAD, B_pad)

    grid = (B_pad // tb_eff,)
    out = pl.pallas_call(
        _decoder_kernel,
        out_shape=jax.ShapeDtypeStruct((PAD, B_pad), jnp.float32),
        grid_spec=pltpu.PrefetchScalarGridSpec(
            num_scalar_prefetch=0,
            grid=grid,
            in_specs=[
                # packed params: constant index_map, whole slab resident in VMEM
                pl.BlockSpec((N_LAYERS, PAD, PAD), lambda i: (0, 0, 0)),
                pl.BlockSpec((N_LAYERS, PAD, 1), lambda i: (0, 0, 0)),
                # latent tile: lane-dense batch tile
                pl.BlockSpec((PAD, tb_eff), lambda i: (0, i)),
            ],
            out_specs=pl.BlockSpec((PAD, tb_eff), lambda i: (0, i)),
        ),
        compiler_params=pltpu.CompilerParams(
            dimension_semantics=("parallel",)),
    )(w_packed, b_packed, xT)

    return out[:OUT_FEATURES, :B].T                          # (B, 11)


def init_params(key, latent_dims=LATENT_DIMS):
    """PyTorch-style Linear init: U(-1/sqrt(fan_in), 1/sqrt(fan_in)).

    Returns list of (W, b) with W in PyTorch (out_features, in_features) orientation.
    """
    dims = (latent_dims,) + LAYER_DIMS[1:]
    keys = jax.random.split(key, N_LAYERS)
    params = []
    for k, fan_in, fan_out in zip(keys, dims[:-1], dims[1:]):
        kw, kb = jax.random.split(k)
        bound = 1.0 / float(fan_in) ** 0.5
        w = jax.random.uniform(kw, (fan_out, fan_in), jnp.float32, -bound, bound)
        b = jax.random.uniform(kb, (fan_out,), jnp.float32, -bound, bound)
        params.append((w, b))
    return params


def pack_params(params):
    """Pack per-layer (W, b) into zero-padded slabs for the kernel."""
    w_packed = jnp.zeros((N_LAYERS, PAD, PAD), jnp.float32)
    b_packed = jnp.zeros((N_LAYERS, PAD, 1), jnp.float32)
    for l, (w, b) in enumerate(params):
        out_f, in_f = w.shape
        w_packed = w_packed.at[l, :out_f, :in_f].set(w)
        b_packed = b_packed.at[l, :out_f, 0].set(b)
    return w_packed, b_packed


def vae_decoder_reference(z, params):
    """Pure-JAX reference matching the PyTorch module."""
    h = z.reshape(z.shape[0], -1).astype(jnp.float32)
    for l, (w, b) in enumerate(params):
        h = h @ w.T + b
        if l < N_LAYERS - 1:
            h = jnp.maximum(h, 0.0)
    return h


if __name__ == "__main__":
    key = jax.random.PRNGKey(0)
    k_param, k_z1, k_z2 = jax.random.split(key, 3)

    params = init_params(k_param, LATENT_DIMS)
    w_packed, b_packed = pack_params(params)

    # small deterministic input: batch=2, latent_dims=3
    z_small = jax.random.normal(k_z1, (2, LATENT_DIMS), jnp.float32)
    y = jax.block_until_ready(vae_decoder_forward(z_small, w_packed, b_packed))
    y_ref = vae_decoder_reference(z_small, params)
    assert y.shape == (2, OUT_FEATURES)
    assert jnp.allclose(y, y_ref, atol=1e-5, rtol=1e-5), "mismatch vs reference (small)"

    # multi-tile check: ragged batch, grid > 1 (exercises tiling / padding path)
    z_big = jax.random.normal(k_z2, (300, LATENT_DIMS), jnp.float32)
    y_big = jax.block_until_ready(
        vae_decoder_forward(z_big, w_packed, b_packed, tb=128))
    y_big_ref = vae_decoder_reference(z_big, params)
    assert y_big.shape == (300, OUT_FEATURES)
    assert jnp.allclose(y_big, y_big_ref, atol=1e-5, rtol=1e-5), "mismatch vs reference (big)"

    print("KERNEL_OK")
</pallas_src>

<mosaic_0001>
module attributes {stable_mosaic.version = 11 : i64} {
  func.func @_decoder_kernel(%arg0: i32, %arg1: memref<7x16x16xf32, #tpu.memory_space<vmem>>, %arg2: memref<7x16x1xf32, #tpu.memory_space<vmem>>, %arg3: memref<16x128xf32, #tpu.memory_space<vmem>>, %arg4: memref<16x128xf32, #tpu.memory_space<vmem>>) attributes {dimension_semantics = [#tpu.dimension_semantics<parallel>], iteration_bounds = array<i64: 1>, scalar_prefetch = 0 : i64, scratch_operands = 0 : i64, tpu.core_type = #tpu.core_type<tc>, window_params = [{pipeline_mode = #tpu.pipeline_mode<synchronous>, transform_indices = @transform_0, window_bounds = array<i64: 7, 16, 16>}, {pipeline_mode = #tpu.pipeline_mode<synchronous>, transform_indices = @transform_1, window_bounds = array<i64: 7, 16, 1>}, {transform_indices = @transform_2, window_bounds = array<i64: 16, 128>}, {transform_indices = @transform_3, window_bounds = array<i64: 16, 128>}]} {
    %c0 = arith.constant 0 : index
    %c0_0 = arith.constant 0 : index
    %0 = vector.load %arg3[%c0, %c0_0] : memref<16x128xf32, #tpu.memory_space<vmem>>, vector<16x128xf32>
    %c0_1 = arith.constant 0 : index
    %c0_2 = arith.constant 0 : index
    %c0_3 = arith.constant 0 : index
    %1 = vector.load %arg1[%c0_1, %c0_2, %c0_3] : memref<7x16x16xf32, #tpu.memory_space<vmem>>, vector<1x16x16xf32>
    %2 = vector.shape_cast %1 : vector<1x16x16xf32> to vector<16x16xf32>
    %c0_4 = arith.constant 0 : index
    %c0_5 = arith.constant 0 : index
    %c0_6 = arith.constant 0 : index
    %3 = vector.load %arg2[%c0_4, %c0_5, %c0_6] : memref<7x16x1xf32, #tpu.memory_space<vmem>>, vector<1x16x1xf32>
    %4 = vector.shape_cast %3 : vector<1x16x1xf32> to vector<16x1xf32>
    %cst = arith.constant dense<0.000000e+00> : vector<16x128xf32>
    %5 = tpu.matmul %2, %0, %cst {dimension_numbers = #tpu.dot_dimension_numbers<[1], [0], [0], [1], [0, 0, 1, 1], [], []>} : vector<16x16xf32>, vector<16x128xf32>, vector<16x128xf32> -> vector<16x128xf32>
    %6 = vector.broadcast %4 : vector<16x1xf32> to vector<16x128xf32>
    %7 = arith.addf %5, %6 : vector<16x128xf32>
    %cst_7 = arith.constant 0.000000e+00 : f32
    %8 = vector.broadcast %cst_7 : f32 to vector<16x128xf32>
    %9 = arith.maximumf %7, %8 : vector<16x128xf32>
    %c1 = arith.constant 1 : index
    %c0_8 = arith.constant 0 : index
    %c0_9 = arith.constant 0 : index
    %10 = vector.load %arg1[%c1, %c0_8, %c0_9] : memref<7x16x16xf32, #tpu.memory_space<vmem>>, vector<1x16x16xf32>
    %11 = vector.shape_cast %10 : vector<1x16x16xf32> to vector<16x16xf32>
    %c1_10 = arith.constant 1 : index
    %c0_11 = arith.constant 0 : index
    %c0_12 = arith.constant 0 : index
    %12 = vector.load %arg2[%c1_10, %c0_11, %c0_12] : memref<7x16x1xf32, #tpu.memory_space<vmem>>, vector<1x16x1xf32>
    %13 = vector.shape_cast %12 : vector<1x16x1xf32> to vector<16x1xf32>
    %cst_13 = arith.constant dense<0.000000e+00> : vector<16x128xf32>
    %14 = tpu.matmul %11, %9, %cst_13 {dimension_numbers = #tpu.dot_dimension_numbers<[1], [0], [0], [1], [0, 0, 1, 1], [], []>} : vector<16x16xf32>, vector<16x128xf32>, vector<16x128xf32> -> vector<16x128xf32>
    %15 = vector.broadcast %13 : vector<16x1xf32> to vector<16x128xf32>
    %16 = arith.addf %14, %15 : vector<16x128xf32>
    %cst_14 = arith.constant 0.000000e+00 : f32
    %17 = vector.broadcast %cst_14 : f32 to vector<16x128xf32>
    %18 = arith.maximumf %16, %17 : vector<16x128xf32>
    %c2 = arith.constant 2 : index
    %c0_15 = arith.constant 0 : index
    %c0_16 = arith.constant 0 : index
    %19 = vector.load %arg1[%c2, %c0_15, %c0_16] : memref<7x16x16xf32, #tpu.memory_space<vmem>>, vector<1x16x16xf32>
    %20 = vector.shape_cast %19 : vector<1x16x16xf32> to vector<16x16xf32>
    %c2_17 = arith.constant 2 : index
    %c0_18 = arith.constant 0 : index
    %c0_19 = arith.constant 0 : index
    %21 = vector.load %arg2[%c2_17, %c0_18, %c0_19] : memref<7x16x1xf32, #tpu.memory_space<vmem>>, vector<1x16x1xf32>
    %22 = vector.shape_cast %21 : vector<1x16x1xf32> to vector<16x1xf32>
    %cst_20 = arith.constant dense<0.000000e+00> : vector<16x128xf32>
    %23 = tpu.matmul %20, %18, %cst_20 {dimension_numbers = #tpu.dot_dimension_numbers<[1], [0], [0], [1], [0, 0, 1, 1], [], []>} : vector<16x16xf32>, vector<16x128xf32>, vector<16x128xf32> -> vector<16x128xf32>
    %24 = vector.broadcast %22 : vector<16x1xf32> to vector<16x128xf32>
    %25 = arith.addf %23, %24 : vector<16x128xf32>
    %cst_21 = arith.constant 0.000000e+00 : f32
    %26 = vector.broadcast %cst_21 : f32 to vector<16x128xf32>
    %27 = arith.maximumf %25, %26 : vector<16x128xf32>
    %c3 = arith.constant 3 : index
    %c0_22 = arith.constant 0 : index
    %c0_23 = arith.constant 0 : index
    %28 = vector.load %arg1[%c3, %c0_22, %c0_23] : memref<7x16x16xf32, #tpu.memory_space<vmem>>, vector<1x16x16xf32>
    %29 = vector.shape_cast %28 : vector<1x16x16xf32> to vector<16x16xf32>
    %c3_24 = arith.constant 3 : index
    %c0_25 = arith.constant 0 : index
    %c0_26 = arith.constant 0 : index
    %30 = vector.load %arg2[%c3_24, %c0_25, %c0_26] : memref<7x16x1xf32, #tpu.memory_space<vmem>>, vector<1x16x1xf32>
    %31 = vector.shape_cast %30 : vector<1x16x1xf32> to vector<16x1xf32>
    %cst_27 = arith.constant dense<0.000000e+00> : vector<16x128xf32>
    %32 = tpu.matmul %29, %27, %cst_27 {dimension_numbers = #tpu.dot_dimension_numbers<[1], [0], [0], [1], [0, 0, 1, 1], [], []>} : vector<16x16xf32>, vector<16x128xf32>, vector<16x128xf32> -> vector<16x128xf32>
    %33 = vector.broadcast %31 : vector<16x1xf32> to vector<16x128xf32>
    %34 = arith.addf %32, %33 : vector<16x128xf32>
    %cst_28 = arith.constant 0.000000e+00 : f32
    %35 = vector.broadcast %cst_28 : f32 to vector<16x128xf32>
    %36 = arith.maximumf %34, %35 : vector<16x128xf32>
    %c4 = arith.constant 4 : index
    %c0_29 = arith.constant 0 : index
    %c0_30 = arith.constant 0 : index
    %37 = vector.load %arg1[%c4, %c0_29, %c0_30] : memref<7x16x16xf32, #tpu.memory_space<vmem>>, vector<1x16x16xf32>
    %38 = vector.shape_cast %37 : vector<1x16x16xf32> to vector<16x16xf32>
    %c4_31 = arith.constant 4 : index
    %c0_32 = arith.constant 0 : index
    %c0_33 = arith.constant 0 : index
    %39 = vector.load %arg2[%c4_31, %c0_32, %c0_33] : memref<7x16x1xf32, #tpu.memory_space<vmem>>, vector<1x16x1xf32>
    %40 = vector.shape_cast %39 : vector<1x16x1xf32> to vector<16x1xf32>
    %cst_34 = arith.constant dense<0.000000e+00> : vector<16x128xf32>
    %41 = tpu.matmul %38, %36, %cst_34 {dimension_numbers = #tpu.dot_dimension_numbers<[1], [0], [0], [1], [0, 0, 1, 1], [], []>} : vector<16x16xf32>, vector<16x128xf32>, vector<16x128xf32> -> vector<16x128xf32>
    %42 = vector.broadcast %40 : vector<16x1xf32> to vector<16x128xf32>
    %43 = arith.addf %41, %42 : vector<16x128xf32>
    %cst_35 = arith.constant 0.000000e+00 : f32
    %44 = vector.broadcast %cst_35 : f32 to vector<16x128xf32>
    %45 = arith.maximumf %43, %44 : vector<16x128xf32>
    %c5 = arith.constant 5 : index
    %c0_36 = arith.constant 0 : index
    %c0_37 = arith.constant 0 : index
    %46 = vector.load %arg1[%c5, %c0_36, %c0_37] : memref<7x16x16xf32, #tpu.memory_space<vmem>>, vector<1x16x16xf32>
    %47 = vector.shape_cast %46 : vector<1x16x16xf32> to vector<16x16xf32>
    %c5_38 = arith.constant 5 : index
    %c0_39 = arith.constant 0 : index
    %c0_40 = arith.constant 0 : index
    %48 = vector.load %arg2[%c5_38, %c0_39, %c0_40] : memref<7x16x1xf32, #tpu.memory_space<vmem>>, vector<1x16x1xf32>
    %49 = vector.shape_cast %48 : vector<1x16x1xf32> to vector<16x1xf32>
    %cst_41 = arith.constant dense<0.000000e+00> : vector<16x128xf32>
    %50 = tpu.matmul %47, %45, %cst_41 {dimension_numbers = #tpu.dot_dimension_numbers<[1], [0], [0], [1], [0, 0, 1, 1], [], []>} : vector<16x16xf32>, vector<16x128xf32>, vector<16x128xf32> -> vector<16x128xf32>
    %51 = vector.broadcast %49 : vector<16x1xf32> to vector<16x128xf32>
    %52 = arith.addf %50, %51 : vector<16x128xf32>
    %cst_42 = arith.constant 0.000000e+00 : f32
    %53 = vector.broadcast %cst_42 : f32 to vector<16x128xf32>
    %54 = arith.maximumf %52, %53 : vector<16x128xf32>
    %c6 = arith.constant 6 : index
    %c0_43 = arith.constant 0 : index
    %c0_44 = arith.constant 0 : index
    %55 = vector.load %arg1[%c6, %c0_43, %c0_44] : memref<7x16x16xf32, #tpu.memory_space<vmem>>, vector<1x16x16xf32>
    %56 = vector.shape_cast %55 : vector<1x16x16xf32> to vector<16x16xf32>
    %c6_45 = arith.constant 6 : index
    %c0_46 = arith.constant 0 : index
    %c0_47 = arith.constant 0 : index
    %57 = vector.load %arg2[%c6_45, %c0_46, %c0_47] : memref<7x16x1xf32, #tpu.memory_space<vmem>>, vector<1x16x1xf32>
    %58 = vector.shape_cast %57 : vector<1x16x1xf32> to vector<16x1xf32>
    %cst_48 = arith.constant dense<0.000000e+00> : vector<16x128xf32>
    %59 = tpu.matmul %56, %54, %cst_48 {dimension_numbers = #tpu.dot_dimension_numbers<[1], [0], [0], [1], [0, 0, 1, 1], [], []>} : vector<16x16xf32>, vector<16x128xf32>, vector<16x128xf32> -> vector<16x128xf32>
    %60 = vector.broadcast %58 : vector<16x1xf32> to vector<16x128xf32>
    %61 = arith.addf %59, %60 : vector<16x128xf32>
    %c0_49 = arith.constant 0 : index
    %c0_50 = arith.constant 0 : index
    %62 = vector.load %arg4[%c0_49, %c0_50] : memref<16x128xf32, #tpu.memory_space<vmem>>, vector<16x128xf32>
    tpu.vector_store %arg4[%c0_49, %c0_50], %61 {strides = array<i32>} : memref<16x128xf32, #tpu.memory_space<vmem>>, vector<16x128xf32>,
    return
  }
  func.func @transform_0(%arg0: i32) -> (i32, i32, i32) {
    %c0_i32 = arith.constant 0 : i32
    %c0_i32_0 = arith.constant 0 : i32
    %c0_i32_1 = arith.constant 0 : i32
    %c0_i32_2 = arith.constant 0 : i32
    return %c0_i32, %c0_i32_0, %c0_i32_1 : i32, i32, i32
  }
  func.func @transform_1(%arg0: i32) -> (i32, i32, i32) {
    %c0_i32 = arith.constant 0 : i32
    %c0_i32_0 = arith.constant 0 : i32
    %c0_i32_1 = arith.constant 0 : i32
    %c0_i32_2 = arith.constant 0 : i32
    return %c0_i32, %c0_i32_0, %c0_i32_1 : i32, i32, i32
  }
  func.func @transform_2(%arg0: i32) -> (i32, i32) {
    %c0_i32 = arith.constant 0 : i32
    %c0_i32_0 = arith.constant 0 : i32
    return %c0_i32, %arg0 : i32, i32
  }
  func.func @transform_3(%arg0: i32) -> (i32, i32) {
    %c0_i32 = arith.constant 0 : i32
    %c0_i32_0 = arith.constant 0 : i32
    return %c0_i32, %arg0 : i32, i32
  }
}

</mosaic_0001>

<llo_original>
// kernel: vae_decoder_forward.1
$region0: #{vae_decoder_forward.1}
  #allocation0 [shape = 'u32[]', space=smem, size = 0x4, offset = 0x4, fixed_abs, tag = 'smem constant byte address 0x4 - core index']
  #allocation1 [shape = 'u32[144,128]{1,0:T(1,128)}', space=vmem, size = 0x12000, scoped, tag = 'internal scratch']
  %s0 = inlined_call_operand.vmem [shape: f32[7,16,16], index: 0, kind: input, shape index: {}]
  %s1 = inlined_call_operand.vmem [shape: f32[7,16,1], index: 1, kind: input, shape index: {}]
  %s2 = inlined_call_operand.vmem [shape: f32[16,128], index: 2, kind: input, shape index: {}]
  %s3 = inlined_call_operand.vmem [shape: f32[16,128], index: 3, kind: output, shape index: {}]
  %s4 = sld [smem:[#allocation0]]
  $region22: #{vae_decoder_forward.1} parent=0
    _
  %s6 = ssub.s32 1, %s4
  %s7 = scalar_select 0, %s6, %s4
  // Predicated region
  $region2: #{vae_decoder_forward.1} parent=0 // pred_check
    _
  $region3: #{vae_decoder_forward.1} parent=0 // pred_check_branch
    %9 = sbr.rel (0) target = $region5
  $region4: #{vae_decoder_forward.1} parent=0 // pred_region
    _
  $region5: #{vae_decoder_forward.1} parent=0 // pred_fallthru
    _
  // Predicated region
  $region6: #{vae_decoder_forward.1} parent=0 // pred_check
    _
  $region7: #{vae_decoder_forward.1} parent=0 // pred_check_branch
    %11 = sbr.rel (0) target = $region9
  $region8: #{vae_decoder_forward.1} parent=0 // pred_region
    _
  $region9: #{vae_decoder_forward.1} parent=0 // pred_fallthru
    _
  // Predicated region
  $region10: #{vae_decoder_forward.1} parent=0 // pred_check
    _
  $region11: #{vae_decoder_forward.1} parent=0 // pred_check_branch
    %13 = sbr.rel (0) target = $region13
  $region12: #{vae_decoder_forward.1} parent=0 // pred_region
    _
  $region13: #{vae_decoder_forward.1} parent=0 // pred_fallthru
    _
  %v14 = vld [vmem:[%s2] sm:$0xff]
  %v15 = vld [vmem:[%s2 + $0x8] sm:$0xff]
  %v16 = vld [vmem:[%s0] sm:$0xff]
  %v17 = vld [vmem:[%s0 + $0x8] sm:$0xff]
  %v18 = vld [vmem:[%s1] sm:$0xff]
  %v19 = vld [vmem:[%s1 + $0x8] sm:$0xff]
  %21 = vset.pattern.permute.xlu0 0
  %22 = vperm.xlu0 %21, %v18
  %v23 = vpop.permute.xlu0 %22
  %26 = vset.pattern.permute.xlu0 0
  %27 = vperm.xlu0 %26, %v19
  %v28 = vpop.permute.xlu0 %27
  %vm30 = vcmask 130048
  %v32 = vsel %vm30, %v16, 0
  %v35 = vsel %vm30, %v17, 0
  %37 = vmatprep.subr.mxu0 0.0
  %38 = vmatpush1.msra.mxu0 0.0
  %39 = vmatprep.subr.mxu0 0.0
  %40 = vmatpush1.msra.mxu0 0.0
  %41 = vmatprep.subr.mxu0 0.0
  %42 = vmatpush1.msra.mxu0 0.0
  %43 = vmatprep.subr.mxu0 0.0
  %44 = vmatpush1.msra.mxu0 0.0
  %45 = vmatprep.subr.mxu0 0.0
  %46 = vmatpush1.msra.mxu0 0.0
  %47 = vmatprep.subr.mxu0 0.0
  %48 = vmatpush1.msra.mxu0 0.0
  %49 = vmatprep.subr.mxu0 0.0
  %50 = vmatpush1.msra.mxu0 0.0
  %51 = vmatprep.subr.mxu0 0.0
  %52 = vmatpush1.msra.mxu0 0.0
  %53 = vmatprep.subr.mxu0 0.0
  %54 = vmatpush1.msra.mxu0 0.0
  %55 = vmatprep.subr.mxu0 0.0
  %56 = vmatpush1.msra.mxu0 0.0
  %57 = vmatprep.subr.mxu0 0.0
  %58 = vmatpush1.msra.mxu0 0.0
  %59 = vmatprep.subr.mxu0 0.0
  %60 = vmatpush1.msra.mxu0 0.0
  %61 = vmatprep.subr.mxu0 0.0
  %62 = vmatpush1.msra.mxu0 0.0
  %63 = vmatprep.subr.mxu0 0.0
  %64 = vmatpush1.msra.mxu0 0.0
  %65 = vmatprep.subr.mxu0 0.0
  %66 = vmatpush1.msra.mxu0 %v15
  %67 = vmatprep.subr.mxu0 0.0
  %68 = vmatpush1.msra.mxu0 %v14
  %69 = vmatprep.subr.mxu0 0.0
  %70 = vmatpush2.msra.mxu0 0.0
  %71 = vmatprep.subr.mxu0 0.0
  %72 = vmatpush2.msra.mxu0 0.0
  %73 = vmatprep.subr.mxu0 0.0
  %74 = vmatpush2.msra.mxu0 0.0
  %75 = vmatprep.subr.mxu0 0.0
  %76 = vmatpush2.msra.mxu0 0.0
  %77 = vmatprep.subr.mxu0 0.0
  %78 = vmatpush2.msra.mxu0 0.0
  %79 = vmatprep.subr.mxu0 0.0
  %80 = vmatpush2.msra.mxu0 0.0
  %81 = vmatprep.subr.mxu0 0.0
  %82 = vmatpush2.msra.mxu0 0.0
  %83 = vmatprep.subr.mxu0 0.0
  %84 = vmatpush2.msra.mxu0 0.0
  %85 = vmatprep.subr.mxu0 0.0
  %86 = vmatpush2.msra.mxu0 0.0
  %87 = vmatprep.subr.mxu0 0.0
  %88 = vmatpush2.msra.mxu0 0.0
  %89 = vmatprep.subr.mxu0 0.0
  %90 = vmatpush2.msra.mxu0 0.0
  %91 = vmatprep.subr.mxu0 0.0
  %92 = vmatpush2.msra.mxu0 0.0
  %93 = vmatprep.subr.mxu0 0.0
  %94 = vmatpush2.msra.mxu0 0.0
  %95 = vmatprep.subr.mxu0 0.0
  %96 = vmatpush2.msra.mxu0 0.0
  %97 = vmatprep.subr.mxu0 0.0
  %98 = vmatpush2.msra.mxu0 0.0
  %99 = vmatprep.subr.mxu0 0.0
  %100 = vmatpush2.msra.mxu0 0.0
  %101 = vmatprep.mubr.f32.mxu0 0.0
  %102 = vmatmul.mubr.f32.gmra.mxu0 %v32
  %v103 = vpop.f32.mrf.mxu0
  %v104 = vadd.f32 %v23, %v103
  %v105 = vpop.f32.mrf.mxu0
  %106 = vmatprep.mubr.f32.mxu0 0.0
  %107 = vmatmul.mubr.f32.gmra.mxu0 %v35
  %v108 = vpop.f32.mrf.mxu0
  %v109 = vadd.f32 %v28, %v108
  %v110 = vpop.f32.mrf.mxu0
  %111 = vdwg.mxu0
  %v112 = vmax.f32 %v104, 0.0
  %v113 = vmax.f32 %v109, 0.0
  %s114 = scalar_lea.vmem %s0, 16
  %v115 = vld [vmem:[%s114] sm:$0xff]
  %v116 = vld [vmem:[%s114 + $0x8] sm:$0xff]
  %s117 = scalar_lea.vmem %s1, 16
  %v118 = vld [vmem:[%s117] sm:$0xff]
  %v119 = vld [vmem:[%s117 + $0x8] sm:$0xff]
  %121 = vset.pattern.permute.xlu0 0
  %122 = vperm.xlu0 %121, %v118
  %v123 = vpop.permute.xlu0 %122
  %126 = vset.pattern.permute.xlu0 0
  %127 = vperm.xlu0 %126, %v119
  %v128 = vpop.permute.xlu0 %127
  %v131 = vsel %vm30, %v115, 0
  %v134 = vsel %vm30, %v116, 0
  %136 = vmatprep.subr.mxu0 0.0
  %137 = vmatpush1.msra.mxu0 0.0
  %138 = vmatprep.subr.mxu0 0.0
  %139 = vmatpush1.msra.mxu0 0.0
  %140 = vmatprep.subr.mxu0 0.0
  %141 = vmatpush1.msra.mxu0 0.0
  %142 = vmatprep.subr.mxu0 0.0
  %143 = vmatpush1.msra.mxu0 0.0
  %144 = vmatprep.subr.mxu0 0.0
  %145 = vmatpush1.msra.mxu0 0.0
  %146 = vmatprep.subr.mxu0 0.0
  %147 = vmatpush1.msra.mxu0 0.0
  %148 = vmatprep.subr.mxu0 0.0
  %149 = vmatpush1.msra.mxu0 0.0
  %150 = vmatprep.subr.mxu0 0.0
  %151 = vmatpush1.msra.mxu0 0.0
  %152 = vmatprep.subr.mxu0 0.0
  %153 = vmatpush1.msra.mxu0 0.0
  %154 = vmatprep.subr.mxu0 0.0
  %155 = vmatpush1.msra.mxu0 0.0
  %156 = vmatprep.subr.mxu0 0.0
  %157 = vmatpush1.msra.mxu0 0.0
  %158 = vmatprep.subr.mxu0 0.0
  %159 = vmatpush1.msra.mxu0 0.0
  %160 = vmatprep.subr.mxu0 0.0
  %161 = vmatpush1.msra.mxu0 0.0
  %162 = vmatprep.subr.mxu0 0.0
  %163 = vmatpush1.msra.mxu0 0.0
  %164 = vmatprep.subr.mxu0 0.0
  %165 = vmatpush1.msra.mxu0 %v113
  %166 = vmatprep.subr.mxu0 0.0
  %167 = vmatpush1.msra.mxu0 %v112
  %168 = vmatprep.subr.mxu0 0.0
  %169 = vmatpush2.msra.mxu0 0.0
  %170 = vmatprep.subr.mxu0 0.0
  %171 = vmatpush2.msra.mxu0 0.0
  %172 = vmatprep.subr.mxu0 0.0
  %173 = vmatpush2.msra.mxu0 0.0
  %174 = vmatprep.subr.mxu0 0.0
  %175 = vmatpush2.msra.mxu0 0.0
  %176 = vmatprep.subr.mxu0 0.0
  %177 = vmatpush2.msra.mxu0 0.0
  %178 = vmatprep.subr.mxu0 0.0
  %179 = vmatpush2.msra.mxu0 0.0
  %180 = vmatprep.subr.mxu0 0.0
  %181 = vmatpush2.msra.mxu0 0.0
  %182 = vmatprep.subr.mxu0 0.0
  %183 = vmatpush2.msra.mxu0 0.0
  %184 = vmatprep.subr.mxu0 0.0
  %185 = vmatpush2.msra.mxu0 0.0
  %186 = vmatprep.subr.mxu0 0.0
  %187 = vmatpush2.msra.mxu0 0.0
  %188 = vmatprep.subr.mxu0 0.0
  %189 = vmatpush2.msra.mxu0 0.0
  %190 = vmatprep.subr.mxu0 0.0
  %191 = vmatpush2.msra.mxu0 0.0
  %192 = vmatprep.subr.mxu0 0.0
  %193 = vmatpush2.msra.mxu0 0.0
  %194 = vmatprep.subr.mxu0 0.0
  %195 = vmatpush2.msra.mxu0 0.0
  %196 = vmatprep.subr.mxu0 0.0
  %197 = vmatpush2.msra.mxu0 0.0
  %198 = vmatprep.subr.mxu0 0.0
  %199 = vmatpush2.msra.mxu0 0.0
  %200 = vmatprep.mubr.f32.mxu0 0.0
  %201 = vmatmul.mubr.f32.gmra.mxu0 %v131
  %v202 = vpop.f32.mrf.mxu0
  %v203 = vadd.f32 %v123, %v202
  %v204 = vpop.f32.mrf.mxu0
  %205 = vmatprep.mubr.f32.mxu0 0.0
  %206 = vmatmul.mubr.f32.gmra.mxu0 %v134
  %v207 = vpop.f32.mrf.mxu0
  %v208 = vadd.f32 %v128, %v207
  %v209 = vpop.f32.mrf.mxu0
  %210 = vdwg.mxu0
  %v211 = vmax.f32 %v203, 0.0
  %v212 = vmax.f32 %v208, 0.0
  %s213 = scalar_lea.vmem %s0, 32
  %v214 = vld [vmem:[%s213] sm:$0xff]
  %v215 = vld [vmem:[%s213 + $0x8] sm:$0xff]
  %s216 = scalar_lea.vmem %s1, 32
  %v217 = vld [vmem:[%s216] sm:$0xff]
  %v218 = vld [vmem:[%s216 + $0x8] sm:$0xff]
  %220 = vset.pattern.permute.xlu0 0
  %221 = vperm.xlu0 %220, %v217
  %v222 = vpop.permute.xlu0 %221
  %225 = vset.pattern.permute.xlu0 0
  %226 = vperm.xlu0 %225, %v218
  %v227 = vpop.permute.xlu0 %226
  %v230 = vsel %vm30, %v214, 0
  %v233 = vsel %vm30, %v215, 0
  %235 = vmatprep.subr.mxu0 0.0
  %236 = vmatpush1.msra.mxu0 0.0
  %237 = vmatprep.subr.mxu0 0.0
  %238 = vmatpush1.msra.mxu0 0.0
  %239 = vmatprep.subr.mxu0 0.0
  %240 = vmatpush1.msra.mxu0 0.0
  %241 = vmatprep.subr.mxu0 0.0
  %242 = vmatpush1.msra.mxu0 0.0
  %243 = vmatprep.subr.mxu0 0.0
  %244 = vmatpush1.msra.mxu0 0.0
  %245 = vmatprep.subr.mxu0 0.0
  %246 = vmatpush1.msra.mxu0 0.0
  %247 = vmatprep.subr.mxu0 0.0
  %248 = vmatpush1.msra.mxu0 0.0
  %249 = vmatprep.subr.mxu0 0.0
  %250 = vmatpush1.msra.mxu0 0.0
  %251 = vmatprep.subr.mxu0 0.0
  %252 = vmatpush1.msra.mxu0 0.0
  %253 = vmatprep.subr.mxu0 0.0
  %254 = vmatpush1.msra.mxu0 0.0
  %255 = vmatprep.subr.mxu0 0.0
  %256 = vmatpush1.msra.mxu0 0.0
  %257 = vmatprep.subr.mxu0 0.0
  %258 = vmatpush1.msra.mxu0 0.0
  %259 = vmatprep.subr.mxu0 0.0
  %260 = vmatpush1.msra.mxu0 0.0
  %261 = vmatprep.subr.mxu0 0.0
  %262 = vmatpush1.msra.mxu0 0.0
  %263 = vmatprep.subr.mxu0 0.0
  %264 = vmatpush1.msra.mxu0 %v212
  %265 = vmatprep.subr.mxu0 0.0
  %266 = vmatpush1.msra.mxu0 %v211
  %267 = vmatprep.subr.mxu0 0.0
  %268 = vmatpush2.msra.mxu0 0.0
  %269 = vmatprep.subr.mxu0 0.0
  %270 = vmatpush2.msra.mxu0 0.0
  %271 = vmatprep.subr.mxu0 0.0
  %272 = vmatpush2.msra.mxu0 0.0
  %273 = vmatprep.subr.mxu0 0.0
  %274 = vmatpush2.msra.mxu0 0.0
  %275 = vmatprep.subr.mxu0 0.0
  %276 = vmatpush2.msra.mxu0 0.0
  %277 = vmatprep.subr.mxu0 0.0
  %278 = vmatpush2.msra.mxu0 0.0
  %279 = vmatprep.subr.mxu0 0.0
  %280 = vmatpush2.msra.mxu0 0.0
  %281 = vmatprep.subr.mxu0 0.0
  %282 = vmatpush2.msra.mxu0 0.0
  %283 = vmatprep.subr.mxu0 0.0
  %284 = vmatpush2.msra.mxu0 0.0
  %285 = vmatprep.subr.mxu0 0.0
  %286 = vmatpush2.msra.mxu0 0.0
  %287 = vmatprep.subr.mxu0 0.0
  %288 = vmatpush2.msra.mxu0 0.0
  %289 = vmatprep.subr.mxu0 0.0
  %290 = vmatpush2.msra.mxu0 0.0
  %291 = vmatprep.subr.mxu0 0.0
  %292 = vmatpush2.msra.mxu0 0.0
  %293 = vmatprep.subr.mxu0 0.0
  %294 = vmatpush2.msra.mxu0 0.0
  %295 = vmatprep.subr.mxu0 0.0
  %296 = vmatpush2.msra.mxu0 0.0
  %297 = vmatprep.subr.mxu0 0.0
  %298 = vmatpush2.msra.mxu0 0.0
  %299 = vmatprep.mubr.f32.mxu0 0.0
  %300 = vmatmul.mubr.f32.gmra.mxu0 %v230
  %v301 = vpop.f32.mrf.mxu0
  %v302 = vadd.f32 %v222, %v301
  %v303 = vpop.f32.mrf.mxu0
  %304 = vmatprep.mubr.f32.mxu0 0.0
  %305 = vmatmul.mubr.f32.gmra.mxu0 %v233
  %v306 = vpop.f32.mrf.mxu0
  %v307 = vadd.f32 %v227, %v306
  %v308 = vpop.f32.mrf.mxu0
  %309 = vdwg.mxu0
  %v310 = vmax.f32 %v302, 0.0
  %v311 = vmax.f32 %v307, 0.0
  %s312 = scalar_lea.vmem %s0, 48
  %v313 = vld [vmem:[%s312] sm:$0xff]
  %v314 = vld [vmem:[%s312 + $0x8] sm:$0xff]
  %s315 = scalar_lea.vmem %s1, 48
  %v316 = vld [vmem:[%s315] sm:$0xff]
  %v317 = vld [vmem:[%s315 + $0x8] sm:$0xff]
  %319 = vset.pattern.permute.xlu0 0
  %320 = vperm.xlu0 %319, %v316
  %v321 = vpop.permute.xlu0 %320
  %324 = vset.pattern.permute.xlu0 0
  %325 = vperm.xlu0 %324, %v317
  %v326 = vpop.permute.xlu0 %325
  %v329 = vsel %vm30, %v313, 0
  %v332 = vsel %vm30, %v314, 0
  %334 = vmatprep.subr.mxu0 0.0
  %335 = vmatpush1.msra.mxu0 0.0
  %336 = vmatprep.subr.mxu0 0.0
  %337 = vmatpush1.msra.mxu0 0.0
  %338 = vmatprep.subr.mxu0 0.0
  %339 = vmatpush1.msra.mxu0 0.0
  %340 = vmatprep.subr.mxu0 0.0
  %341 = vmatpush1.msra.mxu0 0.0
  %342 = vmatprep.subr.mxu0 0.0
  %343 = vmatpush1.msra.mxu0 0.0
  %344 = vmatprep.subr.mxu0 0.0
  %345 = vmatpush1.msra.mxu0 0.0
  %346 = vmatprep.subr.mxu0 0.0
  %347 = vmatpush1.msra.mxu0 0.0
  %348 = vmatprep.subr.mxu0 0.0
  %349 = vmatpush1.msra.mxu0 0.0
  %350 = vmatprep.subr.mxu0 0.0
  %351 = vmatpush1.msra.mxu0 0.0
  %352 = vmatprep.subr.mxu0 0.0
  %353 = vmatpush1.msra.mxu0 0.0
  %354 = vmatprep.subr.mxu0 0.0
  %355 = vmatpush1.msra.mxu0 0.0
  %356 = vmatprep.subr.mxu0 0.0
  %357 = vmatpush1.msra.mxu0 0.0
  %358 = vmatprep.subr.mxu0 0.0
  %359 = vmatpush1.msra.mxu0 0.0
  %360 = vmatprep.subr.mxu0 0.0
  %361 = vmatpush1.msra.mxu0 0.0
  %362 = vmatprep.subr.mxu0 0.0
  %363 = vmatpush1.msra.mxu0 %v311
  %364 = vmatprep.subr.mxu0 0.0
  %365 = vmatpush1.msra.mxu0 %v310
  %366 = vmatprep.subr.mxu0 0.0
  %367 = vmatpush2.msra.mxu0 0.0
  %368 = vmatprep.subr.mxu0 0.0
  %369 = vmatpush2.msra.mxu0 0.0
  %370 = vmatprep.subr.mxu0 0.0
  %371 = vmatpush2.msra.mxu0 0.0
  %372 = vmatprep.subr.mxu0 0.0
  %373 = vmatpush2.msra.mxu0 0.0
  %374 = vmatprep.subr.mxu0 0.0
  %375 = vmatpush2.msra.mxu0 0.0
  %376 = vmatprep.subr.mxu0 0.0
  %377 = vmatpush2.msra.mxu0 0.0
  %378 = vmatprep.subr.mxu0 0.0
  %379 = vmatpush2.msra.mxu0 0.0
  %380 = vmatprep.subr.mxu0 0.0
  %381 = vmatpush2.msra.mxu0 0.0
  %382 = vmatprep.subr.mxu0 0.0
  %383 = vmatpush2.msra.mxu0 0.0
  %384 = vmatprep.subr.mxu0 0.0
  %385 = vmatpush2.msra.mxu0 0.0
  %386 = vmatprep.subr.mxu0 0.0
  %387 = vmatpush2.msra.mxu0 0.0
  %388 = vmatprep.subr.mxu0 0.0
  %389 = vmatpush2.msra.mxu0 0.0
  %390 = vmatprep.subr.mxu0 0.0
  %391 = vmatpush2.msra.mxu0 0.0
  %392 = vmatprep.subr.mxu0 0.0
  %393 = vmatpush2.msra.mxu0 0.0
  %394 = vmatprep.subr.mxu0 0.0
  %395 = vmatpush2.msra.mxu0 0.0
  %396 = vmatprep.subr.mxu0 0.0
  %397 = vmatpush2.msra.mxu0 0.0
  %398 = vmatprep.mubr.f32.mxu0 0.0
  %399 = vmatmul.mubr.f32.gmra.mxu0 %v329
  %v400 = vpop.f32.mrf.mxu0
  %v401 = vadd.f32 %v321, %v400
  %v402 = vpop.f32.mrf.mxu0
  %403 = vmatprep.mubr.f32.mxu0 0.0
  %404 = vmatmul.mubr.f32.gmra.mxu0 %v332
  %v405 = vpop.f32.mrf.mxu0
  %v406 = vadd.f32 %v326, %v405
  %v407 = vpop.f32.mrf.mxu0
  %408 = vdwg.mxu0
  %v409 = vmax.f32 %v401, 0.0
  %v410 = vmax.f32 %v406, 0.0
  %s411 = scalar_lea.vmem %s0, 64
  %v412 = vld [vmem:[%s411] sm:$0xff]
  %v413 = vld [vmem:[%s411 + $0x8] sm:$0xff]
  %s414 = scalar_lea.vmem %s1, 64
  %v415 = vld [vmem:[%s414] sm:$0xff]
  %v416 = vld [vmem:[%s414 + $0x8] sm:$0xff]
  %418 = vset.pattern.permute.xlu0 0
  %419 = vperm.xlu0 %418, %v415
  %v420 = vpop.permute.xlu0 %419
  %423 = vset.pattern.permute.xlu0 0
  %424 = vperm.xlu0 %423, %v416
  %v425 = vpop.permute.xlu0 %424
  %v428 = vsel %vm30, %v412, 0
  %v431 = vsel %vm30, %v413, 0
  %433 = vmatprep.subr.mxu0 0.0
  %434 = vmatpush1.msra.mxu0 0.0
  %435 = vmatprep.subr.mxu0 0.0
  %436 = vmatpush1.msra.mxu0 0.0
  %437 = vmatprep.subr.mxu0 0.0
  %438 = vmatpush1.msra.mxu0 0.0
  %439 = vmatprep.subr.mxu0 0.0
  %440 = vmatpush1.msra.mxu0 0.0
  %441 = vmatprep.subr.mxu0 0.0
  %442 = vmatpush1.msra.mxu0 0.0
  %443 = vmatprep.subr.mxu0 0.0
  %444 = vmatpush1.msra.mxu0 0.0
  %445 = vmatprep.subr.mxu0 0.0
  %446 = vmatpush1.msra.mxu0 0.0
  %447 = vmatprep.subr.mxu0 0.0
  %448 = vmatpush1.msra.mxu0 0.0
  %449 = vmatprep.subr.mxu0 0.0
  %450 = vmatpush1.msra.mxu0 0.0
  %451 = vmatprep.subr.mxu0 0.0
  %452 = vmatpush1.msra.mxu0 0.0
  %453 = vmatprep.subr.mxu0 0.0
  %454 = vmatpush1.msra.mxu0 0.0
  %455 = vmatprep.subr.mxu0 0.0
  %456 = vmatpush1.msra.mxu0 0.0
  %457 = vmatprep.subr.mxu0 0.0
  %458 = vmatpush1.msra.mxu0 0.0
  %459 = vmatprep.subr.mxu0 0.0
  %460 = vmatpush1.msra.mxu0 0.0
  %461 = vmatprep.subr.mxu0 0.0
  %462 = vmatpush1.msra.mxu0 %v410
  %463 = vmatprep.subr.mxu0 0.0
  %464 = vmatpush1.msra.mxu0 %v409
  %465 = vmatprep.subr.mxu0 0.0
  %466 = vmatpush2.msra.mxu0 0.0
  %467 = vmatprep.subr.mxu0 0.0
  %468 = vmatpush2.msra.mxu0 0.0
  %469 = vmatprep.subr.mxu0 0.0
  %470 = vmatpush2.msra.mxu0 0.0
  %471 = vmatprep.subr.mxu0 0.0
  %472 = vmatpush2.msra.mxu0 0.0
  %473 = vmatprep.subr.mxu0 0.0
  %474 = vmatpush2.msra.mxu0 0.0
  %475 = vmatprep.subr.mxu0 0.0
  %476 = vmatpush2.msra.mxu0 0.0
  %477 = vmatprep.subr.mxu0 0.0
  %478 = vmatpush2.msra.mxu0 0.0
  %479 = vmatprep.subr.mxu0 0.0
  %480 = vmatpush2.msra.mxu0 0.0
  %481 = vmatprep.subr.mxu0 0.0
  %482 = vmatpush2.msra.mxu0 0.0
  %483 = vmatprep.subr.mxu0 0.0
  %484 = vmatpush2.msra.mxu0 0.0
  %485 = vmatprep.subr.mxu0 0.0
  %486 = vmatpush2.msra.mxu0 0.0
  %487 = vmatprep.subr.mxu0 0.0
  %488 = vmatpush2.msra.mxu0 0.0
  %489 = vmatprep.subr.mxu0 0.0
  %490 = vmatpush2.msra.mxu0 0.0
  %491 = vmatprep.subr.mxu0 0.0
  %492 = vmatpush2.msra.mxu0 0.0
  %493 = vmatprep.subr.mxu0 0.0
  %494 = vmatpush2.msra.mxu0 0.0
  %495 = vmatprep.subr.mxu0 0.0
  %496 = vmatpush2.msra.mxu0 0.0
  %497 = vmatprep.mubr.f32.mxu0 0.0
  %498 = vmatmul.mubr.f32.gmra.mxu0 %v428
  %v499 = vpop.f32.mrf.mxu0
  %v500 = vadd.f32 %v420, %v499
  %v501 = vpop.f32.mrf.mxu0
  %502 = vmatprep.mubr.f32.mxu0 0.0
  %503 = vmatmul.mubr.f32.gmra.mxu0 %v431
  %v504 = vpop.f32.mrf.mxu0
  %v505 = vadd.f32 %v425, %v504
  %v506 = vpop.f32.mrf.mxu0
  %507 = vdwg.mxu0
  %v508 = vmax.f32 %v500, 0.0
  %v509 = vmax.f32 %v505, 0.0
  %s510 = scalar_lea.vmem %s0, 80
  %v511 = vld [vmem:[%s510] sm:$0xff]
  %v512 = vld [vmem:[%s510 + $0x8] sm:$0xff]
  %s513 = scalar_lea.vmem %s1, 80
  %v514 = vld [vmem:[%s513] sm:$0xff]
  %v515 = vld [vmem:[%s513 + $0x8] sm:$0xff]
  %517 = vset.pattern.permute.xlu0 0
  %518 = vperm.xlu0 %517, %v514
  %v519 = vpop.permute.xlu0 %518
  %522 = vset.pattern.permute.xlu0 0
  %523 = vperm.xlu0 %522, %v515
  %v524 = vpop.permute.xlu0 %523
  %v527 = vsel %vm30, %v511, 0
  %v530 = vsel %vm30, %v512, 0
  %532 = vmatprep.subr.mxu0 0.0
  %533 = vmatpush1.msra.mxu0 0.0
  %534 = vmatprep.subr.mxu0 0.0
  %535 = vmatpush1.msra.mxu0 0.0
  %536 = vmatprep.subr.mxu0 0.0
  %537 = vmatpush1.msra.mxu0 0.0
  %538 = vmatprep.subr.mxu0 0.0
  %539 = vmatpush1.msra.mxu0 0.0
  %540 = vmatprep.subr.mxu0 0.0
  %541 = vmatpush1.msra.mxu0 0.0
  %542 = vmatprep.subr.mxu0 0.0
  %543 = vmatpush1.msra.mxu0 0.0
  %544 = vmatprep.subr.mxu0 0.0
  %545 = vmatpush1.msra.mxu0 0.0
  %546 = vmatprep.subr.mxu0 0.0
  %547 = vmatpush1.msra.mxu0 0.0
  %548 = vmatprep.subr.mxu0 0.0
  %549 = vmatpush1.msra.mxu0 0.0
  %550 = vmatprep.subr.mxu0 0.0
  %551 = vmatpush1.msra.mxu0 0.0
  %552 = vmatprep.subr.mxu0 0.0
  %553 = vmatpush1.msra.mxu0 0.0
  %554 = vmatprep.subr.mxu0 0.0
  %555 = vmatpush1.msra.mxu0 0.0
  %556 = vmatprep.subr.mxu0 0.0
  %557 = vmatpush1.msra.mxu0 0.0
  %558 = vmatprep.subr.mxu0 0.0
  %559 = vmatpush1.msra.mxu0 0.0
  %560 = vmatprep.subr.mxu0 0.0
  %561 = vmatpush1.msra.mxu0 %v509
  %562 = vmatprep.subr.mxu0 0.0
  %563 = vmatpush1.msra.mxu0 %v508
  %564 = vmatprep.subr.mxu0 0.0
  %565 = vmatpush2.msra.mxu0 0.0
  %566 = vmatprep.subr.mxu0 0.0
  %567 = vmatpush2.msra.mxu0 0.0
  %568 = vmatprep.subr.mxu0 0.0
  %569 = vmatpush2.msra.mxu0 0.0
  %570 = vmatprep.subr.mxu0 0.0
  %571 = vmatpush2.msra.mxu0 0.0
  %572 = vmatprep.subr.mxu0 0.0
  %573 = vmatpush2.msra.mxu0 0.0
  %574 = vmatprep.subr.mxu0 0.0
  %575 = vmatpush2.msra.mxu0 0.0
  %576 = vmatprep.subr.mxu0 0.0
  %577 = vmatpush2.msra.mxu0 0.0
  %578 = vmatprep.subr.mxu0 0.0
  %579 = vmatpush2.msra.mxu0 0.0
  %580 = vmatprep.subr.mxu0 0.0
  %581 = vmatpush2.msra.mxu0 0.0
  %582 = vmatprep.subr.mxu0 0.0
  %583 = vmatpush2.msra.mxu0 0.0
  %584 = vmatprep.subr.mxu0 0.0
  %585 = vmatpush2.msra.mxu0 0.0
  %586 = vmatprep.subr.mxu0 0.0
  %587 = vmatpush2.msra.mxu0 0.0
  %588 = vmatprep.subr.mxu0 0.0
  %589 = vmatpush2.msra.mxu0 0.0
  %590 = vmatprep.subr.mxu0 0.0
  %591 = vmatpush2.msra.mxu0 0.0
  %592 = vmatprep.subr.mxu0 0.0
  %593 = vmatpush2.msra.mxu0 0.0
  %594 = vmatprep.subr.mxu0 0.0
  %595 = vmatpush2.msra.mxu0 0.0
  %596 = vmatprep.mubr.f32.mxu0 0.0
  %597 = vmatmul.mubr.f32.gmra.mxu0 %v527
  %v598 = vpop.f32.mrf.mxu0
  %v599 = vadd.f32 %v519, %v598
  %v600 = vpop.f32.mrf.mxu0
  %601 = vmatprep.mubr.f32.mxu0 0.0
  %602 = vmatmul.mubr.f32.gmra.mxu0 %v530
  %v603 = vpop.f32.mrf.mxu0
  %v604 = vadd.f32 %v524, %v603
  %v605 = vpop.f32.mrf.mxu0
  %606 = vdwg.mxu0
  %v607 = vmax.f32 %v599, 0.0
  %v608 = vmax.f32 %v604, 0.0
  %s609 = scalar_lea.vmem %s0, 96
  %v610 = vld [vmem:[%s609] sm:$0xff]
  %v611 = vld [vmem:[%s609 + $0x8] sm:$0xff]
  %s612 = scalar_lea.vmem %s1, 96
  %v613 = vld [vmem:[%s612] sm:$0xff]
  %v614 = vld [vmem:[%s612 + $0x8] sm:$0xff]
  %616 = vset.pattern.permute.xlu0 0
  %617 = vperm.xlu0 %616, %v613
  %v618 = vpop.permute.xlu0 %617
  %621 = vset.pattern.permute.xlu0 0
  %622 = vperm.xlu0 %621, %v614
  %v623 = vpop.permute.xlu0 %622
  %v626 = vsel %vm30, %v610, 0
  %v629 = vsel %vm30, %v611, 0
  %631 = vmatprep.subr.mxu0 0.0
  %632 = vmatpush1.msra.mxu0 0.0
  %633 = vmatprep.subr.mxu0 0.0
  %634 = vmatpush1.msra.mxu0 0.0
  %635 = vmatprep.subr.mxu0 0.0
  %636 = vmatpush1.msra.mxu0 0.0
  %637 = vmatprep.subr.mxu0 0.0
  %638 = vmatpush1.msra.mxu0 0.0
  %639 = vmatprep.subr.mxu0 0.0
  %640 = vmatpush1.msra.mxu0 0.0
  %641 = vmatprep.subr.mxu0 0.0
  %642 = vmatpush1.msra.mxu0 0.0
  %643 = vmatprep.subr.mxu0 0.0
  %644 = vmatpush1.msra.mxu0 0.0
  %645 = vmatprep.subr.mxu0 0.0
  %646 = vmatpush1.msra.mxu0 0.0
  %647 = vmatprep.subr.mxu0 0.0
  %648 = vmatpush1.msra.mxu0 0.0
  %649 = vmatprep.subr.mxu0 0.0
  %650 = vmatpush1.msra.mxu0 0.0
  %651 = vmatprep.subr.mxu0 0.0
  %652 = vmatpush1.msra.mxu0 0.0
  %653 = vmatprep.subr.mxu0 0.0
  %654 = vmatpush1.msra.mxu0 0.0
  %655 = vmatprep.subr.mxu0 0.0
  %656 = vmatpush1.msra.mxu0 0.0
  %657 = vmatprep.subr.mxu0 0.0
  %658 = vmatpush1.msra.mxu0 0.0
  %659 = vmatprep.subr.mxu0 0.0
  %660 = vmatpush1.msra.mxu0 %v608
  %661 = vmatprep.subr.mxu0 0.0
  %662 = vmatpush1.msra.mxu0 %v607
  %663 = vmatprep.subr.mxu0 0.0
  %664 = vmatpush2.msra.mxu0 0.0
  %665 = vmatprep.subr.mxu0 0.0
  %666 = vmatpush2.msra.mxu0 0.0
  %667 = vmatprep.subr.mxu0 0.0
  %668 = vmatpush2.msra.mxu0 0.0
  %669 = vmatprep.subr.mxu0 0.0
  %670 = vmatpush2.msra.mxu0 0.0
  %671 = vmatprep.subr.mxu0 0.0
  %672 = vmatpush2.msra.mxu0 0.0
  %673 = vmatprep.subr.mxu0 0.0
  %674 = vmatpush2.msra.mxu0 0.0
  %675 = vmatprep.subr.mxu0 0.0
  %676 = vmatpush2.msra.mxu0 0.0
  %677 = vmatprep.subr.mxu0 0.0
  %678 = vmatpush2.msra.mxu0 0.0
  %679 = vmatprep.subr.mxu0 0.0
  %680 = vmatpush2.msra.mxu0 0.0
  %681 = vmatprep.subr.mxu0 0.0
  %682 = vmatpush2.msra.mxu0 0.0
  %683 = vmatprep.subr.mxu0 0.0
  %684 = vmatpush2.msra.mxu0 0.0
  %685 = vmatprep.subr.mxu0 0.0
  %686 = vmatpush2.msra.mxu0 0.0
  %687 = vmatprep.subr.mxu0 0.0
  %688 = vmatpush2.msra.mxu0 0.0
  %689 = vmatprep.subr.mxu0 0.0
  %690 = vmatpush2.msra.mxu0 0.0
  %691 = vmatprep.subr.mxu0 0.0
  %692 = vmatpush2.msra.mxu0 0.0
  %693 = vmatprep.subr.mxu0 0.0
  %694 = vmatpush2.msra.mxu0 0.0
  %695 = vmatprep.mubr.f32.mxu0 0.0
  %696 = vmatmul.mubr.f32.gmra.mxu0 %v626
  %v697 = vpop.f32.mrf.mxu0
  %v698 = vadd.f32 %v618, %v697
  %v699 = vpop.f32.mrf.mxu0
  %700 = vmatprep.mubr.f32.mxu0 0.0
  %701 = vmatmul.mubr.f32.gmra.mxu0 %v629
  %v702 = vpop.f32.mrf.mxu0
  %v703 = vadd.f32 %v623, %v702
  %v704 = vpop.f32.mrf.mxu0
  %705 = vdwg.mxu0
  %706 = vst [vmem:[%s3] sm:$0xff] %v698
  %707 = vst [vmem:[%s3 + $0x8] sm:$0xff] %v703
  // Predicated region
  $region14: #{vae_decoder_forward.1} parent=0 // pred_check
    _
  $region15: #{vae_decoder_forward.1} parent=0 // pred_check_branch
    %709 = sbr.rel (0) target = $region17
  $region16: #{vae_decoder_forward.1} parent=0 // pred_region
    _
  $region17: #{vae_decoder_forward.1} parent=0 // pred_fallthru
    _
  // Predicated region
  $region18: #{vae_decoder_forward.1} parent=0 // pred_check
    _
  $region19: #{vae_decoder_forward.1} parent=0 // pred_check_branch
    %711 = sbr.rel (0) target = $region21
  $region20: #{vae_decoder_forward.1} parent=0 // pred_region
    _
  $region21: #{vae_decoder_forward.1} parent=0 // pred_fallthru
    _

</llo_original>
